<compile_context>
chip_gen: v7x
topology: tpu7x:2x2x1
jax: 0.10.0
libtpu: 0.0.40
codegen_flags: <defaults>
</compile_context>

<pallas_src>
import functools

import jax
import jax.numpy as jnp
from jax.experimental import pallas as pl
from jax.experimental.pallas import tpu as pltpu


_LANE_WIDTH = 512      # folded row width (multiple of 128 lanes)
_MAX_TILE_ROWS = 256   # rows per grid step (256*512*4B = 512 KiB f32 block)


def _margin_loss_kernel(x_ref, t_ref, o_ref, *, m_pos, m_neg, w_neg):
    """x_ref: (TR, W) f32/bf16, t_ref: (TR, W) i8/f32/bf16 one-hot, o_ref: (8,128) f32."""
    x = x_ref[...].astype(jnp.float32)
    oh = t_ref[...].astype(jnp.float32)
    pos = jnp.maximum(m_pos - x, 0.0)
    pos = pos * pos
    neg = jnp.maximum(x - m_neg, 0.0)
    neg = neg * neg
    wneg = w_neg * neg
    loss = wneg + oh * (pos - wneg)          # == oh*pos + w_neg*(1-oh)*neg
    partial = jnp.sum(loss)                  # per-tile partial sum (f32)
    # Broadcast the scalar into this step's private output block; the wrapper
    # reads element [0, 0] of each block and sums the G partials.
    o_ref[...] = jnp.full((8, 128), partial, jnp.float32)


def _round_up(n, m):
    return ((n + m - 1) // m) * m


def _fold_lane_dense(a, n_pad, rows, width):
    flat = a.reshape(-1)
    n = flat.shape[0]
    if n_pad > n:
        flat = jnp.pad(flat, (0, n_pad - n))   # zero padding -> zero loss contribution
    return flat.reshape(rows, width)


def margin_loss(x, target, *, m_pos=0.9, m_neg=0.1, w_neg=0.5, onehot=False):
    """Pallas implementation of CapsNet MarginLoss.forward. Returns a scalar f32."""
    B, C = x.shape
    n_elem = B * C

    if x.dtype not in (jnp.float32, jnp.bfloat16):
        x = x.astype(jnp.float32)

    if onehot:
        # PyTorch path uses target.float() directly — may be soft labels, keep values.
        t = target
        if t.dtype not in (jnp.float32, jnp.bfloat16):
            t = t.astype(jnp.float32)
    else:
        # scatter_(1, target.unsqueeze(1), 1) == one-hot; build it as int8 so the
        # target stream costs 1 byte/element instead of a full f32 one-hot matrix.
        labels = target.astype(jnp.int32)
        cls = jax.lax.broadcasted_iota(jnp.int32, (B, C), 1)
        t = (cls == labels[:, None]).astype(jnp.int8)
        # NOTE: out-of-range labels silently give an all-zero one-hot row
        # (PyTorch scatter_ would raise).

    # Lane-dense folding: flatten (B, C) and refold to (R, W) with W a multiple
    # of 128.  The reshape is free when B*C is already a multiple of W*rows;
    # otherwise jnp.pad makes one small copy.
    W = _LANE_WIDTH
    r_needed = pl.cdiv(n_elem, W)
    tile_rows = min(_MAX_TILE_ROWS, _round_up(r_needed, 8))
    R = _round_up(r_needed, tile_rows)
    G = R // tile_rows
    n_pad = R * W

    xf = _fold_lane_dense(x, n_pad, R, W)
    tf = _fold_lane_dense(t, n_pad, R, W)

    kern = functools.partial(_margin_loss_kernel, m_pos=float(m_pos),
                             m_neg=float(m_neg), w_neg=float(w_neg))

    x_bytes = n_pad * jnp.dtype(xf.dtype).itemsize
    t_bytes = n_pad * jnp.dtype(tf.dtype).itemsize
    out_bytes = G * 8 * 128 * 4
    cost = pl.CostEstimate(flops=9 * n_elem, transcendentals=0,
                           bytes_accessed=x_bytes + t_bytes + out_bytes)

    partials = pl.pallas_call(
        kern,
        out_shape=jax.ShapeDtypeStruct((G * 8, 128), jnp.float32),
        grid=(G,),
        in_specs=[
            pl.BlockSpec((tile_rows, W), lambda i: (i, 0)),
            pl.BlockSpec((tile_rows, W), lambda i: (i, 0)),
        ],
        out_specs=pl.BlockSpec((8, 128), lambda i: (i, 0)),
        compiler_params=pltpu.CompilerParams(
            dimension_semantics=("parallel",)),
        cost_estimate=cost,
    )(xf, tf)

    total = jnp.sum(partials[::8, 0])          # one partial per grid step
    return total * (1.0 / n_elem)              # mean over the TRUE element count


def _margin_loss_ref(x, target, *, m_pos=0.9, m_neg=0.1, w_neg=0.5, onehot=False):
    """Pure-JAX reference mirroring the PyTorch forward."""
    x = x.astype(jnp.float32)
    if onehot:
        t = target.astype(jnp.float32)
    else:
        t = jax.nn.one_hot(target, x.shape[1], dtype=jnp.float32)
    pos_term = jnp.maximum(m_pos - x, 0.0) ** 2
    neg_term = jnp.maximum(x - m_neg, 0.0) ** 2
    loss = t * pos_term + w_neg * (1.0 - t) * neg_term
    return jnp.mean(loss)


if __name__ == "__main__":
    key = jax.random.PRNGKey(0)
    kx, kt = jax.random.split(key)

    B, C = 8, 16  # small batch of 8, 16 capsule classes
    x = jax.nn.sigmoid(jax.random.normal(kx, (B, C), dtype=jnp.float32))
    target = jax.random.randint(kt, (B,), 0, C, dtype=jnp.int32)

    # default path (onehot=False, labels -> in-wrapper int8 one-hot)
    out = jax.block_until_ready(margin_loss(x, target))
    ref = _margin_loss_ref(x, target)
    assert jnp.allclose(out, ref, atol=1e-6, rtol=1e-5), (out, ref)

    # onehot=True path (float one-hot / soft labels, folded lane-dense)
    t_oh = jax.nn.one_hot(target, C, dtype=jnp.float32)
    out_oh = jax.block_until_ready(margin_loss(x, t_oh, onehot=True))
    ref_oh = _margin_loss_ref(x, t_oh, onehot=True)
    assert jnp.allclose(out_oh, ref_oh, atol=1e-6, rtol=1e-5), (out_oh, ref_oh)

    # bf16 activations (half the HBM traffic); kernel upcasts to f32 internally.
    x_bf = x.astype(jnp.bfloat16)
    out_bf = jax.block_until_ready(margin_loss(x_bf, target))
    ref_bf = _margin_loss_ref(x_bf.astype(jnp.float32), target)
    assert jnp.allclose(out_bf, ref_bf, atol=1e-6, rtol=1e-5), (out_bf, ref_bf)

    print("KERNEL_OK")
</pallas_src>

<mosaic_0001>
module attributes {stable_mosaic.version = 11 : i64} {
  func.func @_margin_loss_kernel(%arg0: i32, %arg1: memref<8x512xf32, #tpu.memory_space<vmem>>, %arg2: memref<8x512xi8, #tpu.memory_space<vmem>>, %arg3: memref<8x128xf32, #tpu.memory_space<vmem>>) attributes {dimension_semantics = [#tpu.dimension_semantics<parallel>], iteration_bounds = array<i64: 1>, scalar_prefetch = 0 : i64, scratch_operands = 0 : i64, tpu.core_type = #tpu.core_type<tc>, window_params = [{transform_indices = @transform_0, window_bounds = array<i64: 8, 512>}, {transform_indices = @transform_1, window_bounds = array<i64: 8, 512>}, {transform_indices = @transform_2, window_bounds = array<i64: 8, 128>}]} {
    %c0 = arith.constant 0 : index
    %c0_0 = arith.constant 0 : index
    %0 = vector.load %arg1[%c0, %c0_0] : memref<8x512xf32, #tpu.memory_space<vmem>>, vector<8x512xf32>
    %c0_1 = arith.constant 0 : index
    %c0_2 = arith.constant 0 : index
    %1 = vector.load %arg2[%c0_1, %c0_2] : memref<8x512xi8, #tpu.memory_space<vmem>>, vector<8x512xi8>
    %2 = arith.sitofp %1 : vector<8x512xi8> to vector<8x512xf32>
    %cst = arith.constant 0.899999976 : f32
    %3 = vector.broadcast %cst : f32 to vector<8x512xf32>
    %4 = arith.subf %3, %0 : vector<8x512xf32>
    %cst_3 = arith.constant 0.000000e+00 : f32
    %5 = vector.broadcast %cst_3 : f32 to vector<8x512xf32>
    %6 = arith.maximumf %4, %5 : vector<8x512xf32>
    %7 = arith.mulf %6, %6 : vector<8x512xf32>
    %cst_4 = arith.constant 1.000000e-01 : f32
    %8 = vector.broadcast %cst_4 : f32 to vector<8x512xf32>
    %9 = arith.subf %0, %8 : vector<8x512xf32>
    %cst_5 = arith.constant 0.000000e+00 : f32
    %10 = vector.broadcast %cst_5 : f32 to vector<8x512xf32>
    %11 = arith.maximumf %9, %10 : vector<8x512xf32>
    %12 = arith.mulf %11, %11 : vector<8x512xf32>
    %cst_6 = arith.constant 5.000000e-01 : f32
    %13 = vector.broadcast %cst_6 : f32 to vector<8x512xf32>
    %14 = arith.mulf %13, %12 : vector<8x512xf32>
    %15 = arith.subf %7, %14 : vector<8x512xf32>
    %16 = arith.mulf %2, %15 : vector<8x512xf32>
    %17 = arith.addf %14, %16 : vector<8x512xf32>
    %18 = vector.shape_cast %17 : vector<8x512xf32> to vector<1x8x512xf32>
    %cst_7 = arith.constant dense<0.000000e+00> : vector<1xf32>
    %19 = vector.multi_reduction <add>, %18, %cst_7 [1, 2] : vector<1x8x512xf32> to vector<1xf32>
    %20 = vector.shape_cast %19 : vector<1xf32> to vector<1x1x1xf32>
    %21 = vector.extract %20[0, 0, 0] : f32 from vector<1x1x1xf32>
    %22 = vector.broadcast %21 : f32 to vector<8x128xf32>
    %c0_8 = arith.constant 0 : index
    %c0_9 = arith.constant 0 : index
    %23 = vector.load %arg3[%c0_8, %c0_9] : memref<8x128xf32, #tpu.memory_space<vmem>>, vector<8x128xf32>
    tpu.vector_store %arg3[%c0_8, %c0_9], %22 {strides = array<i32>} : memref<8x128xf32, #tpu.memory_space<vmem>>, vector<8x128xf32>,
    return
  }
  func.func @transform_0(%arg0: i32) -> (i32, i32) {
    %c0_i32 = arith.constant 0 : i32
    %c0_i32_0 = arith.constant 0 : i32
    return %arg0, %c0_i32 : i32, i32
  }
  func.func @transform_1(%arg0: i32) -> (i32, i32) {
    %c0_i32 = arith.constant 0 : i32
    %c0_i32_0 = arith.constant 0 : i32
    return %arg0, %c0_i32 : i32, i32
  }
  func.func @transform_2(%arg0: i32) -> (i32, i32) {
    %c0_i32 = arith.constant 0 : i32
    %c0_i32_0 = arith.constant 0 : i32
    return %arg0, %c0_i32 : i32, i32
  }
}

</mosaic_0001>

<llo_original>
// kernel: tpu_custom_call.1
$region0: #{tpu_custom_call.1}
  #allocation0 [shape = 'u32[]', space=smem, size = 0x4, offset = 0x4, fixed_abs, tag = 'smem constant byte address 0x4 - core index']
  #allocation1 [shape = 'u32[144,128]{1,0:T(1,128)}', space=vmem, size = 0x12000, scoped, tag = 'internal scratch']
  %s0 = inlined_call_operand.hbm [shape: f32[8,512], index: 0, kind: input, shape index: {}]
  %s1 = inlined_call_operand.hbm [shape: s8[8,512], index: 1, kind: input, shape index: {}]
  %s2 = inlined_call_operand.hbm [shape: f32[8,128], index: 2, kind: output, shape index: {}]
  %s3 = sld [smem:[#allocation0]]
  $region26: #{tpu_custom_call.1} parent=0
    _
  %s5 = ssub.s32 1, %s3
  %s6 = scalar_select 0, %s5, %s3
  $region1: #{tpu_custom_call.1} parent=0
    #allocation2 [shape = 'u8[16384]{0}', space=vmem, size = 0x4000, scoped, tag = 'input window, operand 0, single buffered']
    #allocation3 [shape = 's32[1]{0}', space=sflag, size = 0x4, scoped, tag = 'scoped memory for tpu_custom_call.1']
    #allocation4 [shape = 's32[1]{0}', space=sflag, size = 0x4, scoped, tag = 'scoped memory for tpu_custom_call.1']
    #allocation5 [shape = 'u8[4096]{0}', space=vmem, size = 0x1000, scoped, tag = 'input window, operand 1, single buffered']
    #allocation6 [shape = 's32[1]{0}', space=sflag, size = 0x4, scoped, tag = 'scoped memory for tpu_custom_call.1']
    #allocation7 [shape = 'u8[4096]{0}', space=vmem, size = 0x1000, scoped, tag = 'output window, operand 0, single buffered']
    %7 = vsyncpa [#allocation3], 0
    %8 = vsyncpa [#allocation6], 0
    %9 = vsyncpa [#allocation4], 0
    // Predicated region
    $region2: #{tpu_custom_call.1} parent=1 // pred_check
      _
    $region3: #{tpu_custom_call.1} parent=1 // pred_check_branch
      %11 = sbr.rel (0) target = $region5
    $region4: #{tpu_custom_call.1} parent=1 // pred_region
      %s13 = ssub.s32 512, 512
      %14 = vsyncadd [#allocation3], %s13
      %s16 = sshll.u32 [#allocation2], 4
      %s17 = int_to_ptr.vmem [resolvable:$true] %s16
      %19 = dma.hbm_to_vmem [thread:$0]  %s0, 512, %s17, [#allocation3]
    $region5: #{tpu_custom_call.1} parent=1 // pred_fallthru
      _
    // Predicated region
    $region6: #{tpu_custom_call.1} parent=1 // pred_check
      _
    $region7: #{tpu_custom_call.1} parent=1 // pred_check_branch
      %21 = sbr.rel (0) target = $region9
    $region8: #{tpu_custom_call.1} parent=1 // pred_region
      %s23 = ssub.s32 128, 128
      %24 = vsyncadd [#allocation6], %s23
      %s26 = sshll.u32 [#allocation5], 4
      %s27 = int_to_ptr.vmem [resolvable:$true] %s26
      %29 = dma.hbm_to_vmem [thread:$0]  %s1, 128, %s27, [#allocation6]
    $region9: #{tpu_custom_call.1} parent=1 // pred_fallthru
      _
    // Predicated region
    $region10: #{tpu_custom_call.1} parent=1 // pred_check
      _
    $region11: #{tpu_custom_call.1} parent=1 // pred_check_branch
      %31 = sbr.rel (0) target = $region13
    $region12: #{tpu_custom_call.1} parent=1 // pred_region
      %32 = dma.done [#allocation3], 512
    $region13: #{tpu_custom_call.1} parent=1 // pred_fallthru
      _
    // Predicated region
    $region14: #{tpu_custom_call.1} parent=1 // pred_check
      _
    $region15: #{tpu_custom_call.1} parent=1 // pred_check_branch
      %34 = sbr.rel (0) target = $region17
    $region16: #{tpu_custom_call.1} parent=1 // pred_region
      %35 = dma.done [#allocation6], 128
    $region17: #{tpu_custom_call.1} parent=1 // pred_fallthru
      _
    %v36 = vld [vmem:[#allocation2] sm:$0xff]
    %v37 = vld [vmem:[#allocation2 + $0x8] sm:$0xff]
    %v38 = vld [vmem:[#allocation2 + $0x10] sm:$0xff]
    %v39 = vld [vmem:[#allocation2 + $0x18] sm:$0xff]
    %v40 = vld [vmem:[#allocation5] sm:$0xff]
    %v41 = vunpack.c.0.s8 %v40
    %v42 = vunpack.c.1.s8 %v40
    %v43 = vunpack.c.2.s8 %v40
    %v44 = vunpack.c.3.s8 %v40
    %v45 = vcvt.s32.f32 %v41
    %v46 = vcvt.s32.f32 %v42
    %v47 = vcvt.s32.f32 %v43
    %v48 = vcvt.s32.f32 %v44
    %v49 = vsub.f32 0.9, %v36
    %v50 = vsub.f32 0.9, %v37
    %v51 = vsub.f32 0.9, %v38
    %v52 = vsub.f32 0.9, %v39
    %v53 = vmax.f32 %v49, 0.0
    %v54 = vmax.f32 %v50, 0.0
    %v55 = vmax.f32 %v51, 0.0
    %v56 = vmax.f32 %v52, 0.0
    %v57 = vmul.f32 %v53, %v53
    %v58 = vmul.f32 %v54, %v54
    %v59 = vmul.f32 %v55, %v55
    %v60 = vmul.f32 %v56, %v56
    %v61 = vsub.f32 %v36, 0.1
    %v62 = vsub.f32 %v37, 0.1
    %v63 = vsub.f32 %v38, 0.1
    %v64 = vsub.f32 %v39, 0.1
    %v65 = vmax.f32 %v61, 0.0
    %v66 = vmax.f32 %v62, 0.0
    %v67 = vmax.f32 %v63, 0.0
    %v68 = vmax.f32 %v64, 0.0
    %v69 = vmul.f32 %v65, %v65
    %v70 = vmul.f32 %v66, %v66
    %v71 = vmul.f32 %v67, %v67
    %v72 = vmul.f32 %v68, %v68
    %v73 = vmul.f32 %v69, 0.5
    %v74 = vmul.f32 %v70, 0.5
    %v75 = vmul.f32 %v71, 0.5
    %v76 = vmul.f32 %v72, 0.5
    %v77 = vsub.f32 %v57, %v73
    %v78 = vsub.f32 %v58, %v74
    %v79 = vsub.f32 %v59, %v75
    %v80 = vsub.f32 %v60, %v76
    %v81 = vmul.f32 %v45, %v77
    %v82 = vmul.f32 %v46, %v78
    %v83 = vmul.f32 %v47, %v79
    %v84 = vmul.f32 %v48, %v80
    %v85 = vadd.f32 %v73, %v81
    %v86 = vadd.f32 %v74, %v82
    %v87 = vadd.f32 %v75, %v83
    %v88 = vadd.f32 %v76, %v84
    %v89 = vadd.f32 %v85, %v86
    %v90 = vadd.f32 %v89, %v87
    %v91 = vadd.f32 %v90, %v88
    %92 = vadd.xlane.f32.xlu0 %v91
    %v93 = vpop.xlane.xlu0 %92
    %v94 = vrot.slane %v93, 4
    %v95 = vadd.f32 %v93, %v94
    %v96 = vrot.slane %v95, 2
    %v97 = vadd.f32 %v95, %v96
    %v98 = vrot.slane %v97, 1
    %v99 = vadd.f32 %v97, %v98
    %s100 = vtos %v99
    %v101 = vstv %s100
    %102 = vst [vmem:[#allocation7] sm:$0xff] %v101
    // Predicated region
    $region18: #{tpu_custom_call.1} parent=1 // pred_check
      _
    $region19: #{tpu_custom_call.1} parent=1 // pred_check_branch
      %104 = sbr.rel (0) target = $region21
    $region20: #{tpu_custom_call.1} parent=1 // pred_region
      %s106 = ssub.s32 128, 128
      %107 = vsyncadd [#allocation4], %s106
      %s109 = sshll.u32 [#allocation7], 4
      %s110 = int_to_ptr.vmem [resolvable:$true] %s109
      %112 = dma.vmem_to_hbm [thread:$0]  %s110, 128, %s2, [#allocation4]
    $region21: #{tpu_custom_call.1} parent=1 // pred_fallthru
      _
    // Predicated region
    $region22: #{tpu_custom_call.1} parent=1 // pred_check
      _
    $region23: #{tpu_custom_call.1} parent=1 // pred_check_branch
      %114 = sbr.rel (0) target = $region25
    $region24: #{tpu_custom_call.1} parent=1 // pred_region
      %115 = dma.done [#allocation4], 128
    $region25: #{tpu_custom_call.1} parent=1 // pred_fallthru
      _
    %116 = vsyncpa [#allocation3], 1
    %117 = vsyncpa [#allocation6], 1
    %118 = vsyncpa [#allocation4], 1

</llo_original>
